<compile_context>
chip_gen: v7x
topology: tpu7x:2x2x1
jax: 0.10.0
libtpu: 0.0.40
codegen_flags: <defaults>
</compile_context>

<pallas_src>
import jax
import jax.numpy as jnp
from jax.experimental import pallas as pl
from jax.experimental.pallas import tpu as pltpu


# --------------------------------------------------------------------------- #
# Pallas kernel: y = s_row * x + b_row on a (tr, tn) tile
# --------------------------------------------------------------------------- #
def _actnorm_kernel(s_ref, b_ref, x_ref, o_ref):
    # s_ref / b_ref: (R_par, 1) f32, resident in VMEM for the whole grid.
    # x_ref / o_ref: (tr, tn) native-dtype tiles.
    tr = x_ref.shape[0]
    row0 = pl.multiple_of(pl.program_id(0) * tr, tr)
    s = s_ref[pl.ds(row0, tr), :]                    # (tr, 1)
    b = b_ref[pl.ds(row0, tr), :]                    # (tr, 1)
    x = x_ref[...].astype(jnp.float32)               # no-op for f32 input
    o_ref[...] = (x * s + b).astype(o_ref.dtype)


def actnorm_forward(x_nchw, scale, loc, *, scale_clamp=1e-3,
                    tr_max=256, tn_max=2048):
    """Forward ActNorm.  Returns (y, logdet) matching the PyTorch module."""
    B, C, H, W = x_nchw.shape
    out_dtype = x_nchw.dtype

    # ---- tiny per-channel parameter math (stays in XLA) --------------------
    scale_c = scale.reshape(C).astype(jnp.float32)
    loc_c = loc.reshape(C).astype(jnp.float32)
    # forward value of _zero_clamp: clamp(|s|, min, max) * sign(s)
    s = jnp.clip(jnp.abs(scale_c), scale_clamp, 1e5) * jnp.sign(scale_c)
    logdet = jnp.float32(H * W) * jnp.sum(jnp.log(jnp.abs(s)))
    bias = s * loc_c                     # fold y = s*(x+loc) -> s*x + (s*loc)

    # ---- transpose/copy-free (rows, pixels) view of NCHW --------------------
    R, N = B * C, H * W
    x2 = x_nchw.reshape(R, N)            # free view, native dtype, no padding

    # Tile selection: whole slab if small, else VMEM-budget-sized tiles.
    tn = N if N <= tn_max else tn_max    # tn_max is a multiple of 128
    tr = R if R <= tr_max else tr_max    # tr_max is a multiple of 16 (bf16 ok)
    grid = (pl.cdiv(R, tr), pl.cdiv(N, tn))

    # Per-row scale/bias (B*C floats).  Pad only these tiny vectors so the
    # resident VMEM block is safely indexable for the ragged last row tile.
    R_par = grid[0] * tr
    s_rows = jnp.tile(s, B)
    b_rows = jnp.tile(bias, B)
    if R_par != R:
        s_rows = jnp.pad(s_rows, (0, R_par - R))
        b_rows = jnp.pad(b_rows, (0, R_par - R))
    s_rows = s_rows.reshape(R_par, 1)
    b_rows = b_rows.reshape(R_par, 1)

    elem = jnp.dtype(out_dtype).itemsize
    cost = pl.CostEstimate(
        flops=2 * R * N,
        transcendentals=0,
        bytes_accessed=2 * R * N * elem + 2 * R_par * 4,
    )

    y2 = pl.pallas_call(
        _actnorm_kernel,
        out_shape=jax.ShapeDtypeStruct((R, N), out_dtype),
        grid=grid,
        in_specs=[
            pl.BlockSpec((R_par, 1), lambda i, j: (0, 0)),   # scale: resident
            pl.BlockSpec((R_par, 1), lambda i, j: (0, 0)),   # bias:  resident
            pl.BlockSpec((tr, tn), lambda i, j: (i, j)),     # x tile
        ],
        out_specs=pl.BlockSpec((tr, tn), lambda i, j: (i, j)),
        compiler_params=pltpu.CompilerParams(
            dimension_semantics=("parallel", "parallel")),
        cost_estimate=cost,
    )(s_rows, b_rows, x2)

    return y2.reshape(B, C, H, W), logdet


# --------------------------------------------------------------------------- #
# Data-dependent initialization (first forward call when initialized == 0)
# --------------------------------------------------------------------------- #
def actnorm_initialize(x_nchw):
    """Pure-JAX equivalent of ActNorm.initialize (one-time, not a hot path)."""
    # TODO(synk): the in-place 'initialized' uint8 buffer flip has no Pallas
    # analogue; data-dependent init is done here in plain JAX and the resulting
    # (loc, scale) are passed to the kernel explicitly.
    _, C, _, _ = x_nchw.shape
    flat = jnp.transpose(x_nchw, (1, 0, 2, 3)).reshape(C, -1)
    mean = jnp.mean(flat, axis=1)
    std = jnp.std(flat, axis=1, ddof=1)        # torch.std default is unbiased
    loc = (-mean).reshape(1, C, 1, 1)
    scale = (1.0 / (std + 1e-6)).reshape(1, C, 1, 1)
    return loc, scale


# --------------------------------------------------------------------------- #
# Pure-JAX reference (mirrors the PyTorch forward exactly)
# --------------------------------------------------------------------------- #
def actnorm_reference(x_nchw, scale, loc, scale_clamp=1e-3):
    s = jnp.clip(jnp.abs(scale), scale_clamp, 1e5) * jnp.sign(scale)
    H, W = x_nchw.shape[2], x_nchw.shape[3]
    logdet = H * W * jnp.sum(jnp.log(jnp.abs(s)))
    return s * (x_nchw + loc), logdet


# --------------------------------------------------------------------------- #
if __name__ == "__main__":
    key = jax.random.PRNGKey(0)
    kx, k1, k2 = jax.random.split(key, 3)

    B, C, H, W = 2, 4, 16, 16                     # NCHW, as in PyTorch
    x = jax.random.normal(kx, (B, C, H, W), dtype=jnp.float32) * 1.7 + 0.3

    # mimic the first forward call: data-dependent init, then the affine
    loc, scale = actnorm_initialize(x)
    scale = scale * (1.0 + 0.05 * jax.random.normal(k1, scale.shape))
    loc = loc + 0.05 * jax.random.normal(k2, loc.shape)

    fwd = jax.jit(actnorm_forward)
    y, logdet = fwd(x, scale, loc)
    y = jax.block_until_ready(y)
    logdet = jax.block_until_ready(logdet)

    y_ref, logdet_ref = actnorm_reference(x, scale, loc)

    assert y.shape == (B, C, H, W) and y.dtype == x.dtype
    assert logdet.shape == ()
    assert jnp.allclose(y, y_ref, atol=1e-4, rtol=1e-4)
    assert jnp.allclose(logdet, logdet_ref, atol=1e-4, rtol=1e-4)
    print("KERNEL_OK")
</pallas_src>

<mosaic_0001>
module attributes {stable_mosaic.version = 11 : i64} {
  func.func @_actnorm_kernel(%arg0: i32, %arg1: i32, %arg2: memref<8x1xf32, #tpu.memory_space<vmem>>, %arg3: memref<8x1xf32, #tpu.memory_space<vmem>>, %arg4: memref<8x256xf32, #tpu.memory_space<vmem>>, %arg5: memref<8x256xf32, #tpu.memory_space<vmem>>) attributes {dimension_semantics = [#tpu.dimension_semantics<parallel>, #tpu.dimension_semantics<parallel>], iteration_bounds = array<i64: 1, 1>, scalar_prefetch = 0 : i64, scratch_operands = 0 : i64, tpu.core_type = #tpu.core_type<tc>, window_params = [{pipeline_mode = #tpu.pipeline_mode<synchronous>, transform_indices = @transform_0, window_bounds = array<i64: 8, 1>}, {pipeline_mode = #tpu.pipeline_mode<synchronous>, transform_indices = @transform_1, window_bounds = array<i64: 8, 1>}, {transform_indices = @transform_2, window_bounds = array<i64: 8, 256>}, {transform_indices = @transform_3, window_bounds = array<i64: 8, 256>}]} {
    %c8_i32 = arith.constant 8 : i32
    %0 = arith.muli %arg0, %c8_i32 : i32
    %1 = tpu.assume_multiple %0, 8 : i32
    %2 = arith.index_cast %1 : i32 to index
    %c0 = arith.constant 0 : index
    %3 = vector.load %arg2[%2, %c0] : memref<8x1xf32, #tpu.memory_space<vmem>>, vector<8x1xf32>
    %4 = arith.index_cast %1 : i32 to index
    %c0_0 = arith.constant 0 : index
    %5 = vector.load %arg3[%4, %c0_0] : memref<8x1xf32, #tpu.memory_space<vmem>>, vector<8x1xf32>
    %c0_1 = arith.constant 0 : index
    %c0_2 = arith.constant 0 : index
    %6 = vector.load %arg4[%c0_1, %c0_2] : memref<8x256xf32, #tpu.memory_space<vmem>>, vector<8x256xf32>
    %7 = vector.broadcast %3 : vector<8x1xf32> to vector<8x256xf32>
    %8 = arith.mulf %6, %7 : vector<8x256xf32>
    %9 = vector.broadcast %5 : vector<8x1xf32> to vector<8x256xf32>
    %10 = arith.addf %8, %9 : vector<8x256xf32>
    %c0_3 = arith.constant 0 : index
    %c0_4 = arith.constant 0 : index
    %11 = vector.load %arg5[%c0_3, %c0_4] : memref<8x256xf32, #tpu.memory_space<vmem>>, vector<8x256xf32>
    tpu.vector_store %arg5[%c0_3, %c0_4], %10 {strides = array<i32>} : memref<8x256xf32, #tpu.memory_space<vmem>>, vector<8x256xf32>,
    return
  }
  func.func @transform_0(%arg0: i32, %arg1: i32) -> (i32, i32) {
    %c0_i32 = arith.constant 0 : i32
    %c0_i32_0 = arith.constant 0 : i32
    %c0_i32_1 = arith.constant 0 : i32
    return %c0_i32, %c0_i32_0 : i32, i32
  }
  func.func @transform_1(%arg0: i32, %arg1: i32) -> (i32, i32) {
    %c0_i32 = arith.constant 0 : i32
    %c0_i32_0 = arith.constant 0 : i32
    %c0_i32_1 = arith.constant 0 : i32
    return %c0_i32, %c0_i32_0 : i32, i32
  }
  func.func @transform_2(%arg0: i32, %arg1: i32) -> (i32, i32) {
    %c0_i32 = arith.constant 0 : i32
    return %arg0, %arg1 : i32, i32
  }
  func.func @transform_3(%arg0: i32, %arg1: i32) -> (i32, i32) {
    %c0_i32 = arith.constant 0 : i32
    return %arg0, %arg1 : i32, i32
  }
}

</mosaic_0001>

<llo_original>
// kernel: tile.1
$region0: #{tile.1}
  %s0 = inlined_call_operand.vmem [shape: f32[2,4], index: 0, kind: input, shape index: {}]
  %s1 = inlined_call_operand.vmem [shape: f32[8,1], index: 1, kind: output, shape index: {}]
  $region1: #{tile.1} parent=0
    #allocation0 [shape = 'u8[4096]{0}', space=vmem, size = 0x1000, scoped, tag = 'scoped mem for input reshape']
    %s3 = sshllo.u32 0, 2
    %v4 = vld [vmem:[%s0] sm:%s3]
    %5 = vst [vmem:[#allocation0] sm:%s3] %v4
    %v6 = vld [vmem:[#allocation0] sm:$0x3]
    %vm7 = vcmask 7168
    %8 = vst.msk [vmem:[%s1] ss:$4 sm:$0x3] %vm7, %v6
    %v9 = vld [vmem:[#allocation0] sm:$0x3]
    %10 = vrot.lane.b32.xlu0 %v9, 127
    %v11 = vpop.permute.xlu0 %10
    %vm12 = vcmask 7168
    %s13 = scalar_lea.vmem %s1, 1
    %14 = vst.msk [vmem:[%s13] ss:$4 sm:$0x3] %vm12, %v11
    %v15 = vld [vmem:[#allocation0] sm:$0x3]
    %16 = vrot.lane.b32.xlu0 %v15, 126
    %v17 = vpop.permute.xlu0 %16
    %vm18 = vcmask 7168
    %s19 = scalar_lea.vmem %s1, 2
    %20 = vst.msk [vmem:[%s19] ss:$4 sm:$0x3] %vm18, %v17
    %v21 = vld [vmem:[#allocation0] sm:$0x3]
    %22 = vrot.lane.b32.xlu0 %v21, 125
    %v23 = vpop.permute.xlu0 %22
    %vm24 = vcmask 7168
    %s25 = scalar_lea.vmem %s1, 3
    %26 = vst.msk [vmem:[%s25] ss:$4 sm:$0x3] %vm24, %v23

// kernel: tile.13
$region0: #{tile.13}
  #allocation0 [shape = 's32[1]{0}', space=sflag, size = 0x4, scoped, tag = 'scoped memory for tile.13']
  %s0 = inlined_call_operand.vmem [shape: f32[4], index: 0, kind: input, shape index: {}]
  %s1 = inlined_call_operand.vmem [shape: f32[2,4], index: 1, kind: output, shape index: {}]
  // Predicated region
  $region2: #{tile.13} parent=0 // pred_check
    _
  $region3: #{tile.13} parent=0 // pred_check_branch
    %3 = sbr.rel (0) target = $region5
  $region4: #{tile.13} parent=0 // pred_region
    _
  $region5: #{tile.13} parent=0 // pred_fallthru
    _
  %v4 = vld [vmem:[%s0] ss:$0 sm:$0xff]
  %5 = vst [vmem:[%s1] sm:$0x3] %v4

// kernel: actnorm_forward.1
$region0: #{actnorm_forward.1}
  #allocation0 [shape = 'u32[]', space=smem, size = 0x4, offset = 0x4, fixed_abs, tag = 'smem constant byte address 0x4 - core index']
  #allocation1 [shape = 'u32[144,128]{1,0:T(1,128)}', space=vmem, size = 0x12000, scoped, tag = 'internal scratch']
  %s0 = inlined_call_operand.vmem [shape: f32[8,1], index: 0, kind: input, shape index: {}]
  %s1 = inlined_call_operand.vmem [shape: f32[8,1], index: 1, kind: input, shape index: {}]
  %s2 = inlined_call_operand.vmem [shape: f32[8,256], index: 2, kind: input, shape index: {}]
  %s3 = inlined_call_operand.vmem [shape: f32[8,256], index: 3, kind: output, shape index: {}]
  %s4 = sld [smem:[#allocation0]]
  $region22: #{actnorm_forward.1} parent=0
    _
  %s6 = ssub.s32 1, %s4
  %s7 = scalar_select 0, %s6, %s4
  // Predicated region
  $region2: #{actnorm_forward.1} parent=0 // pred_check
    _
  $region3: #{actnorm_forward.1} parent=0 // pred_check_branch
    %9 = sbr.rel (0) target = $region5
  $region4: #{actnorm_forward.1} parent=0 // pred_region
    _
  $region5: #{actnorm_forward.1} parent=0 // pred_fallthru
    _
  // Predicated region
  $region6: #{actnorm_forward.1} parent=0 // pred_check
    _
  $region7: #{actnorm_forward.1} parent=0 // pred_check_branch
    %11 = sbr.rel (0) target = $region9
  $region8: #{actnorm_forward.1} parent=0 // pred_region
    _
  $region9: #{actnorm_forward.1} parent=0 // pred_fallthru
    _
  // Predicated region
  $region10: #{actnorm_forward.1} parent=0 // pred_check
    _
  $region11: #{actnorm_forward.1} parent=0 // pred_check_branch
    %13 = sbr.rel (0) target = $region13
  $region12: #{actnorm_forward.1} parent=0 // pred_region
    _
  $region13: #{actnorm_forward.1} parent=0 // pred_fallthru
    _
  %s14 = smul.u32 0, 8
  %s15 = scalar_lea.vmem %s0, %s14
  %v16 = vld [vmem:[%s15] sm:$0xff]
  %s17 = scalar_lea.vmem %s1, %s14
  %v18 = vld [vmem:[%s17] sm:$0xff]
  %v19 = vld [vmem:[%s2] sm:$0xff]
  %v20 = vld [vmem:[%s2 + $0x8] sm:$0xff]
  %22 = vset.pattern.permute.xlu0 0
  %23 = vperm.xlu0 %22, %v16
  %v24 = vpop.permute.xlu0 %23
  %v26 = vmul.f32 %v19, %v24
  %v27 = vmul.f32 %v20, %v24
  %29 = vset.pattern.permute.xlu0 0
  %30 = vperm.xlu0 %29, %v18
  %v31 = vpop.permute.xlu0 %30
  %v33 = vadd.f32 %v26, %v31
  %v34 = vadd.f32 %v27, %v31
  %35 = vst [vmem:[%s3] sm:$0xff] %v33
  %36 = vst [vmem:[%s3 + $0x8] sm:$0xff] %v34
  // Predicated region
  $region14: #{actnorm_forward.1} parent=0 // pred_check
    _
  $region15: #{actnorm_forward.1} parent=0 // pred_check_branch
    %38 = sbr.rel (0) target = $region17
  $region16: #{actnorm_forward.1} parent=0 // pred_region
    _
  $region17: #{actnorm_forward.1} parent=0 // pred_fallthru
    _
  // Predicated region
  $region18: #{actnorm_forward.1} parent=0 // pred_check
    _
  $region19: #{actnorm_forward.1} parent=0 // pred_check_branch
    %40 = sbr.rel (0) target = $region21
  $region20: #{actnorm_forward.1} parent=0 // pred_region
    _
  $region21: #{actnorm_forward.1} parent=0 // pred_fallthru
    _

</llo_original>
